<compile_context>
chip_gen: v7x
topology: tpu7x:2x2x1
jax: 0.10.0
libtpu: 0.0.40
codegen_flags: <defaults>
</compile_context>

<pallas_src>
import jax
import jax.numpy as jnp
from jax.experimental import pallas as pl
from jax.experimental.pallas import tpu as pltpu


_LANE_CANDIDATES = (4096, 2048, 1024, 512, 256, 128)
_MIB = 1024 * 1024


def _ceil_div(a: int, b: int) -> int:
    return -(-a // b)


def _generation_sizing():
    """Return (target_block_bytes, vmem_limit_bytes), sized from the chip's VMEM."""
    vmem_bytes = None
    try:
        info = pltpu.get_tpu_info()
        vmem_bytes = getattr(info, "vmem_capacity_bytes", None)
    except Exception:
        vmem_bytes = None
    if vmem_bytes is None:
        vmem_bytes = 64 * _MIB                 # conservative: v7x per-TC VMEM
    if vmem_bytes >= 96 * _MIB:                # v5e / v6e: 128 MiB physical VMEM
        return 8 * _MIB, 64 * _MIB
    return 8 * _MIB, 48 * _MIB                 # v7x: 64 MiB/TC physical VMEM


def _scale_kernel(scale_ref, x_ref, o_ref):
    # scale_ref: (1, 1) f32 scalar in SMEM; x_ref / o_ref: VMEM tiles.
    # Multiply in the tile's native dtype (bf16-native VPU on v6e/v7x; Mosaic
    # promotes internally on v5e) — skips the f32 pack/unpack round trip.
    s = scale_ref[0, 0].astype(x_ref.dtype)
    o_ref[...] = x_ref[...] * s


def _pick_rows(M, W, itemsize, sub, target_block_bytes):
    """Tile row count: ~target_block_bytes blocks, preferring an exact divisor
    of M (no ragged tail) and an even grid-step count (v7x 2-TC balance)."""
    target = max(sub, (target_block_bytes // (W * itemsize)) // sub * sub)
    if target >= M:
        if M <= sub:
            return sub                          # single minimal block
        # One block would cover everything: split into >= 2 steps so both v7x
        # TensorCores get work.
        target = max(sub, _ceil_div(_ceil_div(M, 2), sub) * sub)
    lo = max(sub, (target // 2) // sub * sub)   # don't shrink blocks below ~half target
    best_r, best_key = target, None
    for r in range(target, lo - 1, -sub):
        steps = _ceil_div(M, r)
        key = (M % r == 0,          # exact divisor: unmasked stores, no padded DMA
               steps % 2 == 0,      # even step count: keeps both v7x TCs fed
               r)                   # then prefer the biggest block (fewest steps)
        if best_key is None or key > best_key:
            best_r, best_key = r, key
    return best_r


def _choose_layout(n, itemsize, target_block_bytes):
    """Pick a lane-dense 2-D view [M, W] (W % 128 == 0) and tile rows.

    Returns (M, W, rows) or None -> caller uses the plain-XLA fallback.
    """
    sub = max(8, 32 // itemsize)    # sublane multiple: 8 f32 / 16 bf16 / 32 int8
    W = next((w for w in _LANE_CANDIDATES if n % w == 0 and n // w >= sub), None)
    if W is None:
        return None                 # no clean layout -> XLA path (no over-tall block)
    M = n // W
    rows = _pick_rows(M, W, itemsize, sub, target_block_bytes)
    return M, W, rows


def _pallas_scale_2d(x2d, scale_f32, rows, vmem_limit_bytes, donate):
    """x2d: [M, W] lane-dense slab.  Returns x2d * scale, same dtype."""
    M, W = x2d.shape
    itemsize = jnp.dtype(x2d.dtype).itemsize
    scale_2d = jnp.reshape(scale_f32, (1, 1))
    return pl.pallas_call(
        _scale_kernel,
        out_shape=jax.ShapeDtypeStruct((M, W), x2d.dtype),
        grid=(_ceil_div(M, rows),),
        in_specs=[
            pl.BlockSpec(memory_space=pltpu.SMEM),        # scalar scale
            pl.BlockSpec((rows, W), lambda i: (i, 0)),    # x tile
        ],
        out_specs=pl.BlockSpec((rows, W), lambda i: (i, 0)),
        compiler_params=pltpu.CompilerParams(
            dimension_semantics=("parallel",),   # lets v7x shard steps over 2 TCs
            vmem_limit_bytes=vmem_limit_bytes,
        ),
        cost_estimate=pl.CostEstimate(
            flops=M * W,
            transcendentals=0,
            bytes_accessed=2 * M * W * itemsize),
        input_output_aliases=({1: 0} if donate else {}),
    )(scale_2d, x2d)


class RotTransScaler:
    """JAX/Pallas port of the PyTorch RotTransScaler module (forward pass)."""

    def __init__(self, minimum: float = 0.001, dtype=jnp.float32,
                 pallas_min_bytes: int = 1 << 20):
        # nn.Parameter(torch.tensor(0.01)) for both scales.
        self.rot_scale = jnp.asarray(0.01, dtype=dtype)
        self.trans_scale = jnp.asarray(0.01, dtype=dtype)
        self.minimum = minimum              # unused in forward (kept for parity)
        # Below this byte count a fused XLA multiply is already at the roofline.
        self.pallas_min_bytes = pallas_min_bytes
        self._block_bytes, self._vmem_limit = _generation_sizing()

    def __call__(self, x: jax.Array, rot_or_trans: str,
                 donate_input: bool = False) -> jax.Array:
        if rot_or_trans == "rot":
            scale = self.rot_scale
        elif rot_or_trans == "trans":
            scale = self.trans_scale
        else:
            raise NotImplementedError(f"{rot_or_trans} mode does not exist.")
        scale_f32 = scale.astype(jnp.float32)

        if not jnp.issubdtype(x.dtype, jnp.floating):
            # PyTorch promotion: int tensor * float scalar -> float tensor.
            return x.astype(jnp.float32) * scale_f32

        n = x.size
        itemsize = jnp.dtype(x.dtype).itemsize
        layout = (_choose_layout(n, itemsize, self._block_bytes)
                  if (n > 0 and n * itemsize >= self.pallas_min_bytes) else None)
        if layout is None:
            # Zero-size, small, or non-lane-divisible inputs.
            return x * scale_f32.astype(x.dtype)

        M, W, rows = layout
        x2d = jnp.reshape(x, (M, W))        # contiguous row-major view, no HBM copy
        y2d = _pallas_scale_2d(x2d, scale_f32, rows, self._vmem_limit, donate_input)
        return jnp.reshape(y2d, x.shape)


if __name__ == "__main__":
    key = jax.random.PRNGKey(0)
    # NCHW-shaped example input (batch=2, channels=4, spatial=16x16).
    x = jax.random.normal(key, (2, 4, 16, 16), dtype=jnp.float32)

    # pallas_min_bytes=0 forces the Pallas kernel path even for this small demo.
    model = RotTransScaler(pallas_min_bytes=0)

    y_rot = model(x, "rot")
    y_trans = model(x, "trans")
    jax.block_until_ready(y_rot)
    jax.block_until_ready(y_trans)

    # Correctness vs. the trivial reference.
    ref_rot = x * model.rot_scale
    ref_trans = x * model.trans_scale
    assert y_rot.shape == x.shape and y_rot.dtype == x.dtype
    assert jnp.allclose(y_rot, ref_rot, atol=1e-6)
    assert jnp.allclose(y_trans, ref_trans, atol=1e-6)

    # bf16 case: exercises the dtype-aware sublane multiple, a 2-step grid,
    # and the masked ragged tail block (M not a multiple of tile rows).
    x_bf16 = jax.random.normal(jax.random.PRNGKey(0), (3, 5, 8, 128),
                               dtype=jnp.bfloat16)
    y_bf16 = model(x_bf16, "trans")
    jax.block_until_ready(y_bf16)
    ref_bf16 = (x_bf16.astype(jnp.float32) * model.trans_scale).astype(jnp.bfloat16)
    assert y_bf16.shape == x_bf16.shape and y_bf16.dtype == x_bf16.dtype
    assert jnp.allclose(y_bf16.astype(jnp.float32), ref_bf16.astype(jnp.float32),
                        atol=1e-2, rtol=1e-2)

    print("KERNEL_OK")
</pallas_src>

<mosaic_0001>
module attributes {stable_mosaic.version = 11 : i64} {
  func.func @_scale_kernel(%arg0: i32, %arg1: memref<1x1xf32, #tpu.memory_space<smem>>, %arg2: memref<8x256xf32, #tpu.memory_space<vmem>>, %arg3: memref<8x256xf32, #tpu.memory_space<vmem>>) attributes {dimension_semantics = [#tpu.dimension_semantics<parallel>], iteration_bounds = array<i64: 1>, scalar_prefetch = 0 : i64, scratch_operands = 0 : i64, tpu.core_type = #tpu.core_type<tc>, window_params = [{transform_indices = @transform_0, window_bounds = array<i64: 1, 1>}, {transform_indices = @transform_1, window_bounds = array<i64: 8, 256>}, {transform_indices = @transform_2, window_bounds = array<i64: 8, 256>}]} {
    %c0 = arith.constant 0 : index
    %c0_0 = arith.constant 0 : index
    %0 = memref.load %arg1[%c0, %c0_0] : memref<1x1xf32, #tpu.memory_space<smem>>
    %c0_1 = arith.constant 0 : index
    %c0_2 = arith.constant 0 : index
    %1 = vector.load %arg2[%c0_1, %c0_2] : memref<8x256xf32, #tpu.memory_space<vmem>>, vector<8x256xf32>
    %2 = vector.broadcast %0 : f32 to vector<8x256xf32>
    %3 = arith.mulf %1, %2 : vector<8x256xf32>
    %c0_3 = arith.constant 0 : index
    %c0_4 = arith.constant 0 : index
    %4 = vector.load %arg3[%c0_3, %c0_4] : memref<8x256xf32, #tpu.memory_space<vmem>>, vector<8x256xf32>
    tpu.vector_store %arg3[%c0_3, %c0_4], %3 {strides = array<i32>} : memref<8x256xf32, #tpu.memory_space<vmem>>, vector<8x256xf32>,
    return
  }
  func.func @transform_0(%arg0: i32) -> (i32, i32) {
    %c0_i32 = arith.constant 0 : i32
    %c0_i32_0 = arith.constant 0 : i32
    %c0_i32_1 = arith.constant 0 : i32
    return %c0_i32, %c0_i32_0 : i32, i32
  }
  func.func @transform_1(%arg0: i32) -> (i32, i32) {
    %c0_i32 = arith.constant 0 : i32
    %c0_i32_0 = arith.constant 0 : i32
    return %arg0, %c0_i32 : i32, i32
  }
  func.func @transform_2(%arg0: i32) -> (i32, i32) {
    %c0_i32 = arith.constant 0 : i32
    %c0_i32_0 = arith.constant 0 : i32
    return %arg0, %c0_i32 : i32, i32
  }
}

</mosaic_0001>

<llo_original>
// kernel: tpu_custom_call.1
$region0: #{tpu_custom_call.1}
  #allocation0 [shape = 'u32[]', space=smem, size = 0x4, offset = 0x4, fixed_abs, tag = 'smem constant byte address 0x4 - core index']
  #allocation1 [shape = 'u32[144,128]{1,0:T(1,128)}', space=vmem, size = 0x12000, scoped, tag = 'internal scratch']
  #allocation2 [shape = 'f32[1,1]{1,0:T(1,128)S(6)}', space=smem, size = 0x200, scoped, tag = 'scoped memory for tpu_custom_call.1']
  %s0 = inlined_call_operand.<no memory space> [shape: f32[1,1], index: 0, kind: input, shape index: {}]
  %s1 = inlined_call_operand.hbm [shape: f32[8,256], index: 1, kind: input, shape index: {}]
  %s2 = inlined_call_operand.hbm [shape: f32[8,256], index: 2, kind: output, shape index: {}]
  %s3 = sld [smem:[#allocation0]]
  $region22: #{tpu_custom_call.1} parent=0
    _
  %s5 = ssub.s32 1, %s3
  %s6 = scalar_select 0, %s5, %s3
  %7 = sst [smem:[#allocation2]] %s0
  $region1: #{tpu_custom_call.1} parent=0
    #allocation3 [shape = 'u8[8192]{0}', space=vmem, size = 0x2000, scoped, tag = 'input window, operand 1, single buffered']
    #allocation4 [shape = 's32[1]{0}', space=sflag, size = 0x4, scoped, tag = 'scoped memory for tpu_custom_call.1']
    #allocation5 [shape = 's32[1]{0}', space=sflag, size = 0x4, scoped, tag = 'scoped memory for tpu_custom_call.1']
    #allocation6 [shape = 'u8[8192]{0}', space=vmem, size = 0x2000, scoped, tag = 'output window, operand 0, single buffered']
    %8 = vsyncpa [#allocation4], 0
    %9 = vsyncpa [#allocation5], 0
    // Predicated region
    $region2: #{tpu_custom_call.1} parent=1 // pred_check
      _
    $region3: #{tpu_custom_call.1} parent=1 // pred_check_branch
      %11 = sbr.rel (0) target = $region5
    $region4: #{tpu_custom_call.1} parent=1 // pred_region
      _
    $region5: #{tpu_custom_call.1} parent=1 // pred_fallthru
      _
    // Predicated region
    $region6: #{tpu_custom_call.1} parent=1 // pred_check
      _
    $region7: #{tpu_custom_call.1} parent=1 // pred_check_branch
      %13 = sbr.rel (0) target = $region9
    $region8: #{tpu_custom_call.1} parent=1 // pred_region
      %s15 = ssub.s32 256, 256
      %16 = vsyncadd [#allocation4], %s15
      %s18 = sshll.u32 [#allocation3], 4
      %s19 = int_to_ptr.vmem [resolvable:$true] %s18
      %21 = dma.hbm_to_vmem [thread:$0]  %s1, 256, %s19, [#allocation4]
    $region9: #{tpu_custom_call.1} parent=1 // pred_fallthru
      _
    // Predicated region
    $region10: #{tpu_custom_call.1} parent=1 // pred_check
      _
    $region11: #{tpu_custom_call.1} parent=1 // pred_check_branch
      %23 = sbr.rel (0) target = $region13
    $region12: #{tpu_custom_call.1} parent=1 // pred_region
      %24 = dma.done [#allocation4], 256
    $region13: #{tpu_custom_call.1} parent=1 // pred_fallthru
      _
    %s25 = sld [smem:[#allocation2]]
    %v26 = vld [vmem:[#allocation3] sm:$0xff]
    %v27 = vld [vmem:[#allocation3 + $0x8] sm:$0xff]
    %v28 = vstv %s25
    %v29 = vmul.f32 %v26, %v28
    %v30 = vmul.f32 %v27, %v28
    %31 = vst [vmem:[#allocation6] sm:$0xff] %v29
    %32 = vst [vmem:[#allocation6 + $0x8] sm:$0xff] %v30
    // Predicated region
    $region14: #{tpu_custom_call.1} parent=1 // pred_check
      _
    $region15: #{tpu_custom_call.1} parent=1 // pred_check_branch
      %34 = sbr.rel (0) target = $region17
    $region16: #{tpu_custom_call.1} parent=1 // pred_region
      %s36 = ssub.s32 256, 256
      %37 = vsyncadd [#allocation5], %s36
      %s39 = sshll.u32 [#allocation6], 4
      %s40 = int_to_ptr.vmem [resolvable:$true] %s39
      %42 = dma.vmem_to_hbm [thread:$0]  %s40, 256, %s2, [#allocation5]
    $region17: #{tpu_custom_call.1} parent=1 // pred_fallthru
      _
    // Predicated region
    $region18: #{tpu_custom_call.1} parent=1 // pred_check
      _
    $region19: #{tpu_custom_call.1} parent=1 // pred_check_branch
      %44 = sbr.rel (0) target = $region21
    $region20: #{tpu_custom_call.1} parent=1 // pred_region
      %45 = dma.done [#allocation5], 256
    $region21: #{tpu_custom_call.1} parent=1 // pred_fallthru
      _
    %46 = vsyncpa [#allocation4], 1
    %47 = vsyncpa [#allocation5], 1

</llo_original>
